<compile_context>
chip_gen: v7x
topology: tpu7x:2x2x1
jax: 0.10.0
libtpu: 0.0.40
codegen_flags: <defaults>
</compile_context>

<pallas_src>
import functools

import jax
import jax.numpy as jnp
from jax.experimental import pallas as pl
from jax.experimental.pallas import tpu as pltpu


def _relu_kernel(x_ref, o_ref, *, slope):
    x = x_ref[...]
    if slope == 0.0:
        o_ref[...] = jnp.maximum(x, jnp.zeros_like(x))
    elif 0.0 < slope <= 1.0:
        # For 0 < slope <= 1: max(x, slope*x) == where(x > 0, x, slope*x).
        o_ref[...] = jnp.maximum(x, x * jnp.asarray(slope, x.dtype))
    else:
        o_ref[...] = jnp.where(x > 0, x, x * jnp.asarray(slope, x.dtype))


_LANE_CANDIDATES = (4096, 2048, 1024, 512, 256)
# ~2 MiB per tile -> in/out double-buffered = 4 tiles = ~8 MiB VMEM.
_TARGET_TILE_BYTES = 2 * 1024 * 1024


def pallas_relu(x, relu: float):
    """Elementwise ReLU / LeakyReLU matching the PyTorch module.

    relu > 0  -> LeakyReLU(negative_slope=relu)
    relu == 0 -> ReLU
    """
    orig_shape = x.shape
    orig_dtype = x.dtype
    itemsize = jnp.dtype(orig_dtype).itemsize

    flat = x.reshape(-1)
    n = flat.shape[0]

    # Minimal ragged handling: pad only up to the next multiple of 128 lanes
    # when numel is not lane-aligned (rare for conv feature maps). The common
    # path performs no padding and no trailing slice.
    n_aligned = pl.cdiv(n, 128) * 128
    needs_pad = n_aligned != n
    if needs_pad:
        flat = jnp.pad(flat, (0, n_aligned - n))

    # Lane-dense slab: widest lane dimension (multiple of 128) dividing the
    # element count while keeping at least 8 sublane rows.
    lanes = 128
    for cand in _LANE_CANDIDATES:
        if n_aligned % cand == 0 and (n_aligned // cand) >= 8:
            lanes = cand
            break
    rows = n_aligned // lanes
    x2d = flat.reshape(rows, lanes)

    # ~2 MiB tiles with a multiple-of-8 sublane count; if the whole slab is
    # smaller than one tile, use a single full-extent block.
    tile_rows = max(8, (_TARGET_TILE_BYTES // (lanes * itemsize)) // 8 * 8)
    block_rows = rows if rows <= tile_rows else tile_rows
    grid = (pl.cdiv(rows, block_rows),)  # ragged last block is masked by Pallas

    kernel = functools.partial(_relu_kernel, slope=float(relu))

    out2d = pl.pallas_call(
        kernel,
        out_shape=jax.ShapeDtypeStruct((rows, lanes), orig_dtype),
        grid=grid,
        in_specs=[pl.BlockSpec((block_rows, lanes), lambda i: (i, 0))],
        out_specs=pl.BlockSpec((block_rows, lanes), lambda i: (i, 0)),
        # In-place semantics of the PyTorch module: reuse the input HBM buffer.
        input_output_aliases={0: 0},
        compiler_params=pltpu.CompilerParams(
            dimension_semantics=("parallel",),
        ),
    )(x2d)

    if needs_pad:
        return out2d.reshape(-1)[:n].reshape(orig_shape)
    return out2d.reshape(orig_shape)


if __name__ == "__main__":
    key = jax.random.PRNGKey(0)
    # NCHW input, small shape consistent with a discriminator feature map.
    x = jax.random.normal(key, (2, 4, 16, 16), dtype=jnp.float32)

    # LeakyReLU branch (relu > 0), as used in SNGAN discriminators.
    slope = 0.1
    y_leaky = pallas_relu(x, relu=slope)
    jax.block_until_ready(y_leaky)
    ref_leaky = jnp.where(x > 0, x, slope * x)
    assert jnp.allclose(y_leaky, ref_leaky, atol=1e-6), "LeakyReLU mismatch"

    # Plain ReLU branch (relu == 0).
    y_relu = pallas_relu(x, relu=0.0)
    jax.block_until_ready(y_relu)
    ref_relu = jnp.maximum(x, 0.0)
    assert jnp.allclose(y_relu, ref_relu, atol=1e-6), "ReLU mismatch"

    print("KERNEL_OK")
</pallas_src>

<mosaic_0001>
module attributes {stable_mosaic.version = 11 : i64} {
  func.func @_relu_kernel(%arg0: i32, %arg1: memref<8x256xf32, #tpu.memory_space<vmem>>, %arg2: memref<8x256xf32, #tpu.memory_space<vmem>>) attributes {dimension_semantics = [#tpu.dimension_semantics<parallel>], iteration_bounds = array<i64: 1>, scalar_prefetch = 0 : i64, scratch_operands = 0 : i64, tpu.core_type = #tpu.core_type<tc>, window_params = [{transform_indices = @transform_0, window_bounds = array<i64: 8, 256>}, {transform_indices = @transform_1, window_bounds = array<i64: 8, 256>}]} {
    %c0 = arith.constant 0 : index
    %c0_0 = arith.constant 0 : index
    %0 = vector.load %arg1[%c0, %c0_0] : memref<8x256xf32, #tpu.memory_space<vmem>>, vector<8x256xf32>
    %cst = arith.constant 1.000000e-01 : f32
    %1 = vector.broadcast %cst : f32 to vector<8x256xf32>
    %2 = arith.mulf %0, %1 : vector<8x256xf32>
    %3 = arith.maximumf %0, %2 : vector<8x256xf32>
    %c0_1 = arith.constant 0 : index
    %c0_2 = arith.constant 0 : index
    %4 = vector.load %arg2[%c0_1, %c0_2] : memref<8x256xf32, #tpu.memory_space<vmem>>, vector<8x256xf32>
    tpu.vector_store %arg2[%c0_1, %c0_2], %3 {strides = array<i32>} : memref<8x256xf32, #tpu.memory_space<vmem>>, vector<8x256xf32>,
    return
  }
  func.func @transform_0(%arg0: i32) -> (i32, i32) {
    %c0_i32 = arith.constant 0 : i32
    %c0_i32_0 = arith.constant 0 : i32
    return %arg0, %c0_i32 : i32, i32
  }
  func.func @transform_1(%arg0: i32) -> (i32, i32) {
    %c0_i32 = arith.constant 0 : i32
    %c0_i32_0 = arith.constant 0 : i32
    return %arg0, %c0_i32 : i32, i32
  }
}

</mosaic_0001>

<llo_original>
// kernel: tpu_custom_call.1
$region0: #{tpu_custom_call.1}
  #allocation0 [shape = 'u32[]', space=smem, size = 0x4, offset = 0x4, fixed_abs, tag = 'smem constant byte address 0x4 - core index']
  #allocation1 [shape = 'u32[144,128]{1,0:T(1,128)}', space=vmem, size = 0x12000, scoped, tag = 'internal scratch']
  %s0 = inlined_call_operand.hbm [shape: f32[8,256], index: 0, kind: input, shape index: {}, may-alias: {0,1}]
  %s1 = inlined_call_operand.hbm [shape: f32[8,256], index: 1, kind: output, shape index: {}, may-alias: {0,1}]
  %s2 = sld [smem:[#allocation0]]
  $region18: #{tpu_custom_call.1} parent=0
    _
  %s4 = ssub.s32 1, %s2
  %s5 = scalar_select 0, %s4, %s2
  $region1: #{tpu_custom_call.1} parent=0
    #allocation2 [shape = 'u8[8192]{0}', space=vmem, size = 0x2000, scoped, tag = 'input window, operand 0, single buffered']
    #allocation3 [shape = 's32[1]{0}', space=sflag, size = 0x4, scoped, tag = 'scoped memory for tpu_custom_call.1']
    #allocation4 [shape = 's32[1]{0}', space=sflag, size = 0x4, scoped, tag = 'scoped memory for tpu_custom_call.1']
    #allocation5 [shape = 'u8[8192]{0}', space=vmem, size = 0x2000, scoped, tag = 'output window, operand 0, single buffered']
    %6 = vsyncpa [#allocation3], 0
    %7 = vsyncpa [#allocation4], 0
    // Predicated region
    $region2: #{tpu_custom_call.1} parent=1 // pred_check
      _
    $region3: #{tpu_custom_call.1} parent=1 // pred_check_branch
      %9 = sbr.rel (0) target = $region5
    $region4: #{tpu_custom_call.1} parent=1 // pred_region
      %s11 = ssub.s32 256, 256
      %12 = vsyncadd [#allocation3], %s11
      %s14 = sshll.u32 [#allocation2], 4
      %s15 = int_to_ptr.vmem [resolvable:$true] %s14
      %17 = dma.hbm_to_vmem [thread:$0]  %s0, 256, %s15, [#allocation3]
    $region5: #{tpu_custom_call.1} parent=1 // pred_fallthru
      _
    // Predicated region
    $region6: #{tpu_custom_call.1} parent=1 // pred_check
      _
    $region7: #{tpu_custom_call.1} parent=1 // pred_check_branch
      %19 = sbr.rel (0) target = $region9
    $region8: #{tpu_custom_call.1} parent=1 // pred_region
      %20 = dma.done [#allocation3], 256
    $region9: #{tpu_custom_call.1} parent=1 // pred_fallthru
      _
    %v21 = vld [vmem:[#allocation2] sm:$0xff]
    %v22 = vld [vmem:[#allocation2 + $0x8] sm:$0xff]
    %v23 = vmul.f32 %v21, 0.1
    %v24 = vmul.f32 %v22, 0.1
    %v25 = vmax.f32 %v21, %v23
    %v26 = vmax.f32 %v22, %v24
    %27 = vst [vmem:[#allocation5] sm:$0xff] %v25
    %28 = vst [vmem:[#allocation5 + $0x8] sm:$0xff] %v26
    // Predicated region
    $region10: #{tpu_custom_call.1} parent=1 // pred_check
      _
    $region11: #{tpu_custom_call.1} parent=1 // pred_check_branch
      %30 = sbr.rel (0) target = $region13
    $region12: #{tpu_custom_call.1} parent=1 // pred_region
      %s32 = ssub.s32 256, 256
      %33 = vsyncadd [#allocation4], %s32
      %s35 = sshll.u32 [#allocation5], 4
      %s36 = int_to_ptr.vmem [resolvable:$true] %s35
      %38 = dma.vmem_to_hbm [thread:$0]  %s36, 256, %s1, [#allocation4]
    $region13: #{tpu_custom_call.1} parent=1 // pred_fallthru
      _
    // Predicated region
    $region14: #{tpu_custom_call.1} parent=1 // pred_check
      _
    $region15: #{tpu_custom_call.1} parent=1 // pred_check_branch
      %40 = sbr.rel (0) target = $region17
    $region16: #{tpu_custom_call.1} parent=1 // pred_region
      %41 = dma.done [#allocation4], 256
    $region17: #{tpu_custom_call.1} parent=1 // pred_fallthru
      _
    %42 = vsyncpa [#allocation3], 1
    %43 = vsyncpa [#allocation4], 1

</llo_original>
